<compile_context>
chip_gen: v6e
topology: v6e:2x2x1
jax: 0.10.0
libtpu: 0.0.40
codegen_flags: <defaults>
</compile_context>

<pallas_src>
import math

import jax
import jax.numpy as jnp
from jax.experimental import pallas as pl
from jax.experimental.pallas import tpu as pltpu


def _partial_sums_kernel(in_ref, logit_ref, tgt_ref, out_ref,
                         sig_acc, tgt_acc, inter_acc,
                         bce_acc, tbce_acc, tinbce_acc):
    k = pl.program_id(1)

    @pl.when(k == 0)
    def _init():
        sig_acc[...] = jnp.zeros_like(sig_acc)
        tgt_acc[...] = jnp.zeros_like(tgt_acc)
        inter_acc[...] = jnp.zeros_like(inter_acc)
        bce_acc[...] = jnp.zeros_like(bce_acc)
        tbce_acc[...] = jnp.zeros_like(tbce_acc)
        tinbce_acc[...] = jnp.zeros_like(tinbce_acc)

    x = logit_ref[...].astype(jnp.float32)      # logits   (N, 8, T)
    t = tgt_ref[...].astype(jnp.float32)        # targets  (N, 8, T)
    inp = in_ref[...].astype(jnp.float32)       # input    (N, 8, T)

    # Shared transcendental: e = exp(-|x|) feeds both the stable sigmoid and the
    # stable BCE-with-logits.
    e = jnp.exp(-jnp.abs(x))
    sig = jnp.where(x >= 0.0, 1.0, e) / (1.0 + e)           # sigmoid(x)
    bce = jnp.maximum(x, 0.0) - x * t + jnp.log1p(e)        # BCEWithLogits (none)

    # Pure element-wise accumulation: no cross-lane reductions in the hot loop.
    sig_acc[...] += sig
    tgt_acc[...] += t
    inter_acc[...] += sig * t
    bce_acc[...] += bce
    tbce_acc[...] += t * bce
    tinbce_acc[...] += t * inp * bce

    @pl.when(k == pl.num_programs(1) - 1)
    def _finalize():
        n = sig_acc.shape[0]

        def rsum(acc):                            # (N, 8, T) -> (N, 1)
            return jnp.sum(jnp.sum(acc[...], axis=2), axis=1, keepdims=True)

        sums = (rsum(inter_acc), rsum(sig_acc), rsum(tgt_acc),
                rsum(bce_acc), rsum(tbce_acc), rsum(tinbce_acc))

        # Pack the six per-sample sums into lanes 0..5 of a lane-aligned block.
        lane = jax.lax.broadcasted_iota(jnp.int32, (n, 128), 1)
        res = jnp.zeros((n, 128), jnp.float32)
        for j, s in enumerate(sums):
            res = jnp.where(lane == j, s, res)
        out_ref[...] = res


def _round_up(x, m):
    return (x + m - 1) // m * m


def weighted_bce_dice_color_loss(inp, out, tgt, *, tile_d=None, num_cores=2,
                                 vmem_budget_bytes=20 * 1024 * 1024):
    """inp/out/tgt: (N, ...) float arrays (any float dtype). Returns scalar f32 loss."""
    n = inp.shape[0]
    d = math.prod(inp.shape[1:])

    inp2 = inp.reshape(n, d)
    out2 = out.reshape(n, d)
    tgt2 = tgt.reshape(n, d)

    # --- pick a lane-tile size so the double-buffered working set fits VMEM ---
    d8_min = pl.cdiv(d, 8)                            # lanes per sublane row (min)
    if tile_d is None:
        bytes_per_lane = n * 8 * (
            2 * (inp2.dtype.itemsize + out2.dtype.itemsize + tgt2.dtype.itemsize)
            + 6 * 4)                                  # dbl-buffered inputs + f32 accs
        tile_d = max(128, (vmem_budget_bytes // max(bytes_per_lane, 1)) // 128 * 128)
        tile_d = min(tile_d, 32768)
    tile_d = min(_round_up(tile_d, 128), _round_up(d8_min, 128))

    num_tiles = pl.cdiv(d8_min, tile_d)
    p = num_cores if num_tiles >= num_cores else 1    # v7x: 2 TCs; v5e/v6e: harmless
    num_tiles = _round_up(num_tiles, p)
    tiles_per_core = num_tiles // p
    d8 = num_tiles * tile_d
    d_pad = 8 * d8

    # --- pad so the padded tail contributes exactly 0 to every sum ---
    # tgt=0, inp=0 and logits=-1e4  =>  sigmoid==0, bce==0, all products == 0.
    pad = d_pad - d
    if pad:
        inp2 = jnp.pad(inp2, ((0, 0), (0, pad)))
        tgt2 = jnp.pad(tgt2, ((0, 0), (0, pad)))
        out2 = jnp.pad(out2, ((0, 0), (0, pad)),
                       constant_values=jnp.asarray(-1e4, out2.dtype))

    # Sublane-pack: (N, D_pad) -> (N, 8, D_pad/8); native dtypes kept for the DMA.
    inp3 = inp2.reshape(n, 8, d8)
    out3 = out2.reshape(n, 8, d8)
    tgt3 = tgt2.reshape(n, 8, d8)

    feat_spec = pl.BlockSpec((n, 8, tile_d),
                             lambda pi, k: (0, 0, pi * tiles_per_core + k))

    parts = pl.pallas_call(
        _partial_sums_kernel,
        out_shape=jax.ShapeDtypeStruct((p, n, 128), jnp.float32),
        grid_spec=pltpu.PrefetchScalarGridSpec(
            num_scalar_prefetch=0,
            grid=(p, tiles_per_core),
            in_specs=[feat_spec, feat_spec, feat_spec],
            out_specs=pl.BlockSpec((None, n, 128), lambda pi, k: (pi, 0, 0)),
            scratch_shapes=[pltpu.VMEM((n, 8, tile_d), jnp.float32)] * 6,
        ),
        compiler_params=pltpu.CompilerParams(
            dimension_semantics=("parallel", "arbitrary"),
            vmem_limit_bytes=32 * 1024 * 1024),
    )(inp3, out3, tgt3)

    # --- tiny (~30 flop) combine in plain JAX ---
    sums = parts[:, :, :6].sum(axis=0)                # (N, 6)
    inter_s, sig_s, tgt_s = sums[:, 0], sums[:, 1], sums[:, 2]
    bce_s, tbce_s, tinbce_s = sums[:, 3], sums[:, 4], sums[:, 5]

    smooth = jnp.float32(1e-5)
    total = jnp.float32(n * d)

    dice_per = (2.0 * inter_s + smooth) / (sig_s + tgt_s + smooth)
    dice = 1.0 - dice_per.sum() / jnp.float32(n)

    unweighted_bce = bce_s.sum() / total
    disease_loss = tbce_s.sum() / total
    tgt_total = tgt_s.sum()
    # NOTE: divides by zero if the mask is all zeros (same hazard as the PyTorch ref).
    ratio = (total - tgt_total) / tgt_total
    weighted_bce = unweighted_bce + (ratio - 1.0) * disease_loss
    color_reg = tinbce_s.sum() / total

    return 0.5 * weighted_bce + dice + 0.2 * color_reg


def _reference(inp, out, tgt):
    """Pure-JAX reference mirroring the PyTorch module."""
    inp = inp.astype(jnp.float32)
    out = out.astype(jnp.float32)
    tgt = tgt.astype(jnp.float32)
    n = inp.shape[0]
    smooth = 1e-5
    sig = jax.nn.sigmoid(out).reshape(n, -1)
    t2 = tgt.reshape(n, -1)
    inter = (sig * t2).sum(1)
    dice_per = (2.0 * inter + smooth) / (sig.sum(1) + t2.sum(1) + smooth)
    dice = 1.0 - dice_per.sum() / n

    bce = jnp.maximum(out, 0.0) - out * tgt + jnp.log1p(jnp.exp(-jnp.abs(out)))
    unweighted = jnp.mean(bce)
    disease = jnp.mean(tgt * bce)
    ratio = jnp.sum(1.0 - tgt) / jnp.sum(tgt)
    wbce = unweighted + (ratio - 1.0) * disease
    color = jnp.mean(tgt * inp * bce)
    return 0.5 * wbce + dice + 0.2 * color


if __name__ == "__main__":
    key = jax.random.PRNGKey(0)
    k1, k2, k3 = jax.random.split(key, 3)

    N, C, H, W = 2, 4, 16, 16
    inp = jax.random.uniform(k1, (N, C, H, W), dtype=jnp.float32)            # image-like
    out = jax.random.normal(k2, (N, C, H, W), dtype=jnp.float32)             # logits
    tgt = (jax.random.uniform(k3, (N, C, H, W)) > 0.7).astype(jnp.float32)   # binary mask

    loss = weighted_bce_dice_color_loss(inp, out, tgt)
    loss = jax.block_until_ready(loss)

    ref = _reference(inp, out, tgt)
    assert jnp.allclose(loss, ref, rtol=1e-5, atol=1e-5), (loss, ref)

    print("KERNEL_OK")
</pallas_src>

<mosaic_0001>
module attributes {stable_mosaic.version = 11 : i64} {
  func.func @_partial_sums_kernel(%arg0: i32, %arg1: i32, %arg2: memref<2x8x128xf32, #tpu.memory_space<vmem>>, %arg3: memref<2x8x128xf32, #tpu.memory_space<vmem>>, %arg4: memref<2x8x128xf32, #tpu.memory_space<vmem>>, %arg5: memref<1x2x128xf32, #tpu.memory_space<vmem>>, %arg6: memref<2x8x128xf32, #tpu.memory_space<vmem>>, %arg7: memref<2x8x128xf32, #tpu.memory_space<vmem>>, %arg8: memref<2x8x128xf32, #tpu.memory_space<vmem>>, %arg9: memref<2x8x128xf32, #tpu.memory_space<vmem>>, %arg10: memref<2x8x128xf32, #tpu.memory_space<vmem>>, %arg11: memref<2x8x128xf32, #tpu.memory_space<vmem>>) attributes {dimension_semantics = [#tpu.dimension_semantics<parallel>, #tpu.dimension_semantics<arbitrary>], iteration_bounds = array<i64: 1, 1>, scalar_prefetch = 0 : i64, scratch_operands = 6 : i64, tpu.core_type = #tpu.core_type<tc>, window_params = [{transform_indices = @transform_0, window_bounds = array<i64: 2, 8, 128>}, {transform_indices = @transform_1, window_bounds = array<i64: 2, 8, 128>}, {transform_indices = @transform_2, window_bounds = array<i64: 2, 8, 128>}, {transform_indices = @transform_3, window_bounds = array<i64: 1, 2, 128>}]} {
    %c0_i32 = arith.constant 0 : i32
    %0 = arith.cmpi eq, %arg1, %c0_i32 : i32
    %1 = arith.extui %0 : i1 to i32
    %c0_i32_0 = arith.constant 0 : i32
    %2 = arith.cmpi ne, %1, %c0_i32_0 : i32
    scf.if %2 {
      %cst_51 = arith.constant 0.000000e+00 : f32
      %48 = vector.broadcast %cst_51 : f32 to vector<2x8x128xf32>
      %c0_52 = arith.constant 0 : index
      %c0_53 = arith.constant 0 : index
      %c0_54 = arith.constant 0 : index
      %49 = vector.load %arg6[%c0_52, %c0_53, %c0_54] : memref<2x8x128xf32, #tpu.memory_space<vmem>>, vector<2x8x128xf32>
      tpu.vector_store %arg6[%c0_52, %c0_53, %c0_54], %48 {strides = array<i32>} : memref<2x8x128xf32, #tpu.memory_space<vmem>>, vector<2x8x128xf32>,
      %cst_55 = arith.constant 0.000000e+00 : f32
      %50 = vector.broadcast %cst_55 : f32 to vector<2x8x128xf32>
      %c0_56 = arith.constant 0 : index
      %c0_57 = arith.constant 0 : index
      %c0_58 = arith.constant 0 : index
      %51 = vector.load %arg7[%c0_56, %c0_57, %c0_58] : memref<2x8x128xf32, #tpu.memory_space<vmem>>, vector<2x8x128xf32>
      tpu.vector_store %arg7[%c0_56, %c0_57, %c0_58], %50 {strides = array<i32>} : memref<2x8x128xf32, #tpu.memory_space<vmem>>, vector<2x8x128xf32>,
      %cst_59 = arith.constant 0.000000e+00 : f32
      %52 = vector.broadcast %cst_59 : f32 to vector<2x8x128xf32>
      %c0_60 = arith.constant 0 : index
      %c0_61 = arith.constant 0 : index
      %c0_62 = arith.constant 0 : index
      %53 = vector.load %arg8[%c0_60, %c0_61, %c0_62] : memref<2x8x128xf32, #tpu.memory_space<vmem>>, vector<2x8x128xf32>
      tpu.vector_store %arg8[%c0_60, %c0_61, %c0_62], %52 {strides = array<i32>} : memref<2x8x128xf32, #tpu.memory_space<vmem>>, vector<2x8x128xf32>,
      %cst_63 = arith.constant 0.000000e+00 : f32
      %54 = vector.broadcast %cst_63 : f32 to vector<2x8x128xf32>
      %c0_64 = arith.constant 0 : index
      %c0_65 = arith.constant 0 : index
      %c0_66 = arith.constant 0 : index
      %55 = vector.load %arg9[%c0_64, %c0_65, %c0_66] : memref<2x8x128xf32, #tpu.memory_space<vmem>>, vector<2x8x128xf32>
      tpu.vector_store %arg9[%c0_64, %c0_65, %c0_66], %54 {strides = array<i32>} : memref<2x8x128xf32, #tpu.memory_space<vmem>>, vector<2x8x128xf32>,
      %cst_67 = arith.constant 0.000000e+00 : f32
      %56 = vector.broadcast %cst_67 : f32 to vector<2x8x128xf32>
      %c0_68 = arith.constant 0 : index
      %c0_69 = arith.constant 0 : index
      %c0_70 = arith.constant 0 : index
      %57 = vector.load %arg10[%c0_68, %c0_69, %c0_70] : memref<2x8x128xf32, #tpu.memory_space<vmem>>, vector<2x8x128xf32>
      tpu.vector_store %arg10[%c0_68, %c0_69, %c0_70], %56 {strides = array<i32>} : memref<2x8x128xf32, #tpu.memory_space<vmem>>, vector<2x8x128xf32>,
      %cst_71 = arith.constant 0.000000e+00 : f32
      %58 = vector.broadcast %cst_71 : f32 to vector<2x8x128xf32>
      %c0_72 = arith.constant 0 : index
      %c0_73 = arith.constant 0 : index
      %c0_74 = arith.constant 0 : index
      %59 = vector.load %arg11[%c0_72, %c0_73, %c0_74] : memref<2x8x128xf32, #tpu.memory_space<vmem>>, vector<2x8x128xf32>
      tpu.vector_store %arg11[%c0_72, %c0_73, %c0_74], %58 {strides = array<i32>} : memref<2x8x128xf32, #tpu.memory_space<vmem>>, vector<2x8x128xf32>,
    } else {
    }
    %c0 = arith.constant 0 : index
    %c0_1 = arith.constant 0 : index
    %c0_2 = arith.constant 0 : index
    %3 = vector.load %arg3[%c0, %c0_1, %c0_2] : memref<2x8x128xf32, #tpu.memory_space<vmem>>, vector<2x8x128xf32>
    %c0_3 = arith.constant 0 : index
    %c0_4 = arith.constant 0 : index
    %c0_5 = arith.constant 0 : index
    %4 = vector.load %arg4[%c0_3, %c0_4, %c0_5] : memref<2x8x128xf32, #tpu.memory_space<vmem>>, vector<2x8x128xf32>
    %c0_6 = arith.constant 0 : index
    %c0_7 = arith.constant 0 : index
    %c0_8 = arith.constant 0 : index
    %5 = vector.load %arg2[%c0_6, %c0_7, %c0_8] : memref<2x8x128xf32, #tpu.memory_space<vmem>>, vector<2x8x128xf32>
    %6 = math.absf %3 : vector<2x8x128xf32>
    %cst = arith.constant 0.000000e+00 : f32
    %7 = vector.broadcast %cst : f32 to vector<2x8x128xf32>
    %8 = arith.subf %7, %6 : vector<2x8x128xf32>
    %9 = math.exp %8 : vector<2x8x128xf32>
    %cst_9 = arith.constant 0.000000e+00 : f32
    %10 = vector.broadcast %cst_9 : f32 to vector<2x8x128xf32>
    %11 = arith.cmpf oge, %3, %10 : vector<2x8x128xf32>
    %cst_10 = arith.constant 1.000000e+00 : f32
    %12 = vector.broadcast %cst_10 : f32 to vector<2x8x128xf32>
    %13 = arith.select %11, %12, %9 : vector<2x8x128xi1>, vector<2x8x128xf32>
    %cst_11 = arith.constant 1.000000e+00 : f32
    %14 = vector.broadcast %cst_11 : f32 to vector<2x8x128xf32>
    %15 = arith.addf %14, %9 : vector<2x8x128xf32>
    %16 = arith.divf %13, %15 : vector<2x8x128xf32>
    %cst_12 = arith.constant 0.000000e+00 : f32
    %17 = vector.broadcast %cst_12 : f32 to vector<2x8x128xf32>
    %18 = arith.maximumf %3, %17 : vector<2x8x128xf32>
    %19 = arith.mulf %3, %4 : vector<2x8x128xf32>
    %20 = arith.subf %18, %19 : vector<2x8x128xf32>
    %21 = math.log1p %9 : vector<2x8x128xf32>
    %22 = arith.addf %20, %21 : vector<2x8x128xf32>
    %c0_13 = arith.constant 0 : index
    %c0_14 = arith.constant 0 : index
    %c0_15 = arith.constant 0 : index
    %23 = vector.load %arg6[%c0_13, %c0_14, %c0_15] : memref<2x8x128xf32, #tpu.memory_space<vmem>>, vector<2x8x128xf32>
    %24 = arith.addf %23, %16 : vector<2x8x128xf32>
    %c0_16 = arith.constant 0 : index
    %c0_17 = arith.constant 0 : index
    %c0_18 = arith.constant 0 : index
    %25 = vector.load %arg6[%c0_16, %c0_17, %c0_18] : memref<2x8x128xf32, #tpu.memory_space<vmem>>, vector<2x8x128xf32>
    tpu.vector_store %arg6[%c0_16, %c0_17, %c0_18], %24 {strides = array<i32>} : memref<2x8x128xf32, #tpu.memory_space<vmem>>, vector<2x8x128xf32>,
    %c0_19 = arith.constant 0 : index
    %c0_20 = arith.constant 0 : index
    %c0_21 = arith.constant 0 : index
    %26 = vector.load %arg7[%c0_19, %c0_20, %c0_21] : memref<2x8x128xf32, #tpu.memory_space<vmem>>, vector<2x8x128xf32>
    %27 = arith.addf %26, %4 : vector<2x8x128xf32>
    %c0_22 = arith.constant 0 : index
    %c0_23 = arith.constant 0 : index
    %c0_24 = arith.constant 0 : index
    %28 = vector.load %arg7[%c0_22, %c0_23, %c0_24] : memref<2x8x128xf32, #tpu.memory_space<vmem>>, vector<2x8x128xf32>
    tpu.vector_store %arg7[%c0_22, %c0_23, %c0_24], %27 {strides = array<i32>} : memref<2x8x128xf32, #tpu.memory_space<vmem>>, vector<2x8x128xf32>,
    %c0_25 = arith.constant 0 : index
    %c0_26 = arith.constant 0 : index
    %c0_27 = arith.constant 0 : index
    %29 = vector.load %arg8[%c0_25, %c0_26, %c0_27] : memref<2x8x128xf32, #tpu.memory_space<vmem>>, vector<2x8x128xf32>
    %30 = arith.mulf %16, %4 : vector<2x8x128xf32>
    %31 = arith.addf %29, %30 : vector<2x8x128xf32>
    %c0_28 = arith.constant 0 : index
    %c0_29 = arith.constant 0 : index
    %c0_30 = arith.constant 0 : index
    %32 = vector.load %arg8[%c0_28, %c0_29, %c0_30] : memref<2x8x128xf32, #tpu.memory_space<vmem>>, vector<2x8x128xf32>
    tpu.vector_store %arg8[%c0_28, %c0_29, %c0_30], %31 {strides = array<i32>} : memref<2x8x128xf32, #tpu.memory_space<vmem>>, vector<2x8x128xf32>,
    %c0_31 = arith.constant 0 : index
    %c0_32 = arith.constant 0 : index
    %c0_33 = arith.constant 0 : index
    %33 = vector.load %arg9[%c0_31, %c0_32, %c0_33] : memref<2x8x128xf32, #tpu.memory_space<vmem>>, vector<2x8x128xf32>
    %34 = arith.addf %33, %22 : vector<2x8x128xf32>
    %c0_34 = arith.constant 0 : index
    %c0_35 = arith.constant 0 : index
    %c0_36 = arith.constant 0 : index
    %35 = vector.load %arg9[%c0_34, %c0_35, %c0_36] : memref<2x8x128xf32, #tpu.memory_space<vmem>>, vector<2x8x128xf32>
    tpu.vector_store %arg9[%c0_34, %c0_35, %c0_36], %34 {strides = array<i32>} : memref<2x8x128xf32, #tpu.memory_space<vmem>>, vector<2x8x128xf32>,
    %c0_37 = arith.constant 0 : index
    %c0_38 = arith.constant 0 : index
    %c0_39 = arith.constant 0 : index
    %36 = vector.load %arg10[%c0_37, %c0_38, %c0_39] : memref<2x8x128xf32, #tpu.memory_space<vmem>>, vector<2x8x128xf32>
    %37 = arith.mulf %4, %22 : vector<2x8x128xf32>
    %38 = arith.addf %36, %37 : vector<2x8x128xf32>
    %c0_40 = arith.constant 0 : index
    %c0_41 = arith.constant 0 : index
    %c0_42 = arith.constant 0 : index
    %39 = vector.load %arg10[%c0_40, %c0_41, %c0_42] : memref<2x8x128xf32, #tpu.memory_space<vmem>>, vector<2x8x128xf32>
    tpu.vector_store %arg10[%c0_40, %c0_41, %c0_42], %38 {strides = array<i32>} : memref<2x8x128xf32, #tpu.memory_space<vmem>>, vector<2x8x128xf32>,
    %c0_43 = arith.constant 0 : index
    %c0_44 = arith.constant 0 : index
    %c0_45 = arith.constant 0 : index
    %40 = vector.load %arg11[%c0_43, %c0_44, %c0_45] : memref<2x8x128xf32, #tpu.memory_space<vmem>>, vector<2x8x128xf32>
    %41 = arith.mulf %4, %5 : vector<2x8x128xf32>
    %42 = arith.mulf %41, %22 : vector<2x8x128xf32>
    %43 = arith.addf %40, %42 : vector<2x8x128xf32>
    %c0_46 = arith.constant 0 : index
    %c0_47 = arith.constant 0 : index
    %c0_48 = arith.constant 0 : index
    %44 = vector.load %arg11[%c0_46, %c0_47, %c0_48] : memref<2x8x128xf32, #tpu.memory_space<vmem>>, vector<2x8x128xf32>
    tpu.vector_store %arg11[%c0_46, %c0_47, %c0_48], %43 {strides = array<i32>} : memref<2x8x128xf32, #tpu.memory_space<vmem>>, vector<2x8x128xf32>,
    %c0_i32_49 = arith.constant 0 : i32
    %45 = arith.cmpi eq, %arg1, %c0_i32_49 : i32
    %46 = arith.extui %45 : i1 to i32
    %c0_i32_50 = arith.constant 0 : i32
    %47 = arith.cmpi ne, %46, %c0_i32_50 : i32
    scf.if %47 {
      %c0_51 = arith.constant 0 : index
      %c0_52 = arith.constant 0 : index
      %c0_53 = arith.constant 0 : index
      %48 = vector.load %arg8[%c0_51, %c0_52, %c0_53] : memref<2x8x128xf32, #tpu.memory_space<vmem>>, vector<2x8x128xf32>
      %cst_54 = arith.constant dense<0.000000e+00> : vector<2x8xf32>
      %49 = vector.multi_reduction <add>, %48, %cst_54 [2] : vector<2x8x128xf32> to vector<2x8xf32>
      %cst_55 = arith.constant dense<0.000000e+00> : vector<2xf32>
      %50 = vector.multi_reduction <add>, %49, %cst_55 [1] : vector<2x8xf32> to vector<2xf32>
      %51 = vector.shape_cast %50 : vector<2xf32> to vector<2x1xf32>
      %c0_56 = arith.constant 0 : index
      %c0_57 = arith.constant 0 : index
      %c0_58 = arith.constant 0 : index
      %52 = vector.load %arg6[%c0_56, %c0_57, %c0_58] : memref<2x8x128xf32, #tpu.memory_space<vmem>>, vector<2x8x128xf32>
      %cst_59 = arith.constant dense<0.000000e+00> : vector<2x8xf32>
      %53 = vector.multi_reduction <add>, %52, %cst_59 [2] : vector<2x8x128xf32> to vector<2x8xf32>
      %cst_60 = arith.constant dense<0.000000e+00> : vector<2xf32>
      %54 = vector.multi_reduction <add>, %53, %cst_60 [1] : vector<2x8xf32> to vector<2xf32>
      %55 = vector.shape_cast %54 : vector<2xf32> to vector<2x1xf32>
      %c0_61 = arith.constant 0 : index
      %c0_62 = arith.constant 0 : index
      %c0_63 = arith.constant 0 : index
      %56 = vector.load %arg7[%c0_61, %c0_62, %c0_63] : memref<2x8x128xf32, #tpu.memory_space<vmem>>, vector<2x8x128xf32>
      %cst_64 = arith.constant dense<0.000000e+00> : vector<2x8xf32>
      %57 = vector.multi_reduction <add>, %56, %cst_64 [2] : vector<2x8x128xf32> to vector<2x8xf32>
      %cst_65 = arith.constant dense<0.000000e+00> : vector<2xf32>
      %58 = vector.multi_reduction <add>, %57, %cst_65 [1] : vector<2x8xf32> to vector<2xf32>
      %59 = vector.shape_cast %58 : vector<2xf32> to vector<2x1xf32>
      %c0_66 = arith.constant 0 : index
      %c0_67 = arith.constant 0 : index
      %c0_68 = arith.constant 0 : index
      %60 = vector.load %arg9[%c0_66, %c0_67, %c0_68] : memref<2x8x128xf32, #tpu.memory_space<vmem>>, vector<2x8x128xf32>
      %cst_69 = arith.constant dense<0.000000e+00> : vector<2x8xf32>
      %61 = vector.multi_reduction <add>, %60, %cst_69 [2] : vector<2x8x128xf32> to vector<2x8xf32>
      %cst_70 = arith.constant dense<0.000000e+00> : vector<2xf32>
      %62 = vector.multi_reduction <add>, %61, %cst_70 [1] : vector<2x8xf32> to vector<2xf32>
      %63 = vector.shape_cast %62 : vector<2xf32> to vector<2x1xf32>
      %c0_71 = arith.constant 0 : index
      %c0_72 = arith.constant 0 : index
      %c0_73 = arith.constant 0 : index
      %64 = vector.load %arg10[%c0_71, %c0_72, %c0_73] : memref<2x8x128xf32, #tpu.memory_space<vmem>>, vector<2x8x128xf32>
      %cst_74 = arith.constant dense<0.000000e+00> : vector<2x8xf32>
      %65 = vector.multi_reduction <add>, %64, %cst_74 [2] : vector<2x8x128xf32> to vector<2x8xf32>
      %cst_75 = arith.constant dense<0.000000e+00> : vector<2xf32>
      %66 = vector.multi_reduction <add>, %65, %cst_75 [1] : vector<2x8xf32> to vector<2xf32>
      %67 = vector.shape_cast %66 : vector<2xf32> to vector<2x1xf32>
      %c0_76 = arith.constant 0 : index
      %c0_77 = arith.constant 0 : index
      %c0_78 = arith.constant 0 : index
      %68 = vector.load %arg11[%c0_76, %c0_77, %c0_78] : memref<2x8x128xf32, #tpu.memory_space<vmem>>, vector<2x8x128xf32>
      %cst_79 = arith.constant dense<0.000000e+00> : vector<2x8xf32>
      %69 = vector.multi_reduction <add>, %68, %cst_79 [2] : vector<2x8x128xf32> to vector<2x8xf32>
      %cst_80 = arith.constant dense<0.000000e+00> : vector<2xf32>
      %70 = vector.multi_reduction <add>, %69, %cst_80 [1] : vector<2x8xf32> to vector<2xf32>
      %71 = vector.shape_cast %70 : vector<2xf32> to vector<2x1xf32>
      %72 = tpu.iota {dimensions = array<i32: 1>} : vector<2x128xi32>
      %cst_81 = arith.constant 0.000000e+00 : f32
      %73 = vector.broadcast %cst_81 : f32 to vector<2x128xf32>
      %c0_i32_82 = arith.constant 0 : i32
      %74 = vector.broadcast %c0_i32_82 : i32 to vector<2x128xi32>
      %75 = arith.cmpi eq, %72, %74 : vector<2x128xi32>
      %76 = vector.shape_cast %51 : vector<2x1xf32> to vector<2x1xf32>
      %77 = vector.broadcast %76 : vector<2x1xf32> to vector<2x128xf32>
      %78 = arith.select %75, %77, %73 : vector<2x128xi1>, vector<2x128xf32>
      %c1_i32 = arith.constant 1 : i32
      %79 = vector.broadcast %c1_i32 : i32 to vector<2x128xi32>
      %80 = arith.cmpi eq, %72, %79 : vector<2x128xi32>
      %81 = vector.shape_cast %55 : vector<2x1xf32> to vector<2x1xf32>
      %82 = vector.broadcast %81 : vector<2x1xf32> to vector<2x128xf32>
      %83 = arith.select %80, %82, %78 : vector<2x128xi1>, vector<2x128xf32>
      %c2_i32 = arith.constant 2 : i32
      %84 = vector.broadcast %c2_i32 : i32 to vector<2x128xi32>
      %85 = arith.cmpi eq, %72, %84 : vector<2x128xi32>
      %86 = vector.shape_cast %59 : vector<2x1xf32> to vector<2x1xf32>
      %87 = vector.broadcast %86 : vector<2x1xf32> to vector<2x128xf32>
      %88 = arith.select %85, %87, %83 : vector<2x128xi1>, vector<2x128xf32>
      %c3_i32 = arith.constant 3 : i32
      %89 = vector.broadcast %c3_i32 : i32 to vector<2x128xi32>
      %90 = arith.cmpi eq, %72, %89 : vector<2x128xi32>
      %91 = vector.shape_cast %63 : vector<2x1xf32> to vector<2x1xf32>
      %92 = vector.broadcast %91 : vector<2x1xf32> to vector<2x128xf32>
      %93 = arith.select %90, %92, %88 : vector<2x128xi1>, vector<2x128xf32>
      %c4_i32 = arith.constant 4 : i32
      %94 = vector.broadcast %c4_i32 : i32 to vector<2x128xi32>
      %95 = arith.cmpi eq, %72, %94 : vector<2x128xi32>
      %96 = vector.shape_cast %67 : vector<2x1xf32> to vector<2x1xf32>
      %97 = vector.broadcast %96 : vector<2x1xf32> to vector<2x128xf32>
      %98 = arith.select %95, %97, %93 : vector<2x128xi1>, vector<2x128xf32>
      %c5_i32 = arith.constant 5 : i32
      %99 = vector.broadcast %c5_i32 : i32 to vector<2x128xi32>
      %100 = arith.cmpi eq, %72, %99 : vector<2x128xi32>
      %101 = vector.shape_cast %71 : vector<2x1xf32> to vector<2x1xf32>
      %102 = vector.broadcast %101 : vector<2x1xf32> to vector<2x128xf32>
      %103 = arith.select %100, %102, %98 : vector<2x128xi1>, vector<2x128xf32>
      %c0_83 = arith.constant 0 : index
      %c0_84 = arith.constant 0 : index
      %c0_85 = arith.constant 0 : index
      %104 = vector.load %arg5[%c0_83, %c0_84, %c0_85] : memref<1x2x128xf32, #tpu.memory_space<vmem>>, vector<1x2x128xf32>
      %105 = vector.shape_cast %104 : vector<1x2x128xf32> to vector<2x128xf32>
      %106 = vector.shape_cast %103 : vector<2x128xf32> to vector<1x2x128xf32>
      tpu.vector_store %arg5[%c0_83, %c0_84, %c0_85], %106 {strides = array<i32>} : memref<1x2x128xf32, #tpu.memory_space<vmem>>, vector<1x2x128xf32>,
    } else {
    }
    return
  }
  func.func @transform_0(%arg0: i32, %arg1: i32) -> (i32, i32, i32) {
    %c1_i32 = arith.constant 1 : i32
    %0 = arith.muli %arg0, %c1_i32 : i32
    %1 = arith.addi %0, %arg1 : i32
    %c0_i32 = arith.constant 0 : i32
    %c0_i32_0 = arith.constant 0 : i32
    %c0_i32_1 = arith.constant 0 : i32
    return %c0_i32, %c0_i32_0, %1 : i32, i32, i32
  }
  func.func @transform_1(%arg0: i32, %arg1: i32) -> (i32, i32, i32) {
    %c1_i32 = arith.constant 1 : i32
    %0 = arith.muli %arg0, %c1_i32 : i32
    %1 = arith.addi %0, %arg1 : i32
    %c0_i32 = arith.constant 0 : i32
    %c0_i32_0 = arith.constant 0 : i32
    %c0_i32_1 = arith.constant 0 : i32
    return %c0_i32, %c0_i32_0, %1 : i32, i32, i32
  }
  func.func @transform_2(%arg0: i32, %arg1: i32) -> (i32, i32, i32) {
    %c1_i32 = arith.constant 1 : i32
    %0 = arith.muli %arg0, %c1_i32 : i32
    %1 = arith.addi %0, %arg1 : i32
    %c0_i32 = arith.constant 0 : i32
    %c0_i32_0 = arith.constant 0 : i32
    %c0_i32_1 = arith.constant 0 : i32
    return %c0_i32, %c0_i32_0, %1 : i32, i32, i32
  }
  func.func @transform_3(%arg0: i32, %arg1: i32) -> (i32, i32, i32) {
    %c0_i32 = arith.constant 0 : i32
    %c0_i32_0 = arith.constant 0 : i32
    %c0_i32_1 = arith.constant 0 : i32
    return %arg0, %c0_i32, %c0_i32_0 : i32, i32, i32
  }
}

</mosaic_0001>

<llo_original>
// kernel: tpu_custom_call.1
$region0: #{tpu_custom_call.1}
  #allocation0 [shape = 'u32[]', space=smem, size = 0x4, offset = 0x4, fixed_abs, tag = 'smem constant byte address 0x4 - core index']
  #allocation1 [shape = 'u32[144,128]{1,0:T(1,128)}', space=vmem, size = 0x12000, scoped, tag = 'internal scratch']
  #allocation2 [shape = 'f32[2,8,128]{2,1,0:T(8,128)}', space=vmem, size = 0x2000, scoped, tag = 'scratch operand']
  #allocation3 [shape = 'f32[2,8,128]{2,1,0:T(8,128)}', space=vmem, size = 0x2000, scoped, tag = 'scratch operand']
  #allocation4 [shape = 'f32[2,8,128]{2,1,0:T(8,128)}', space=vmem, size = 0x2000, scoped, tag = 'scratch operand']
  #allocation5 [shape = 'f32[2,8,128]{2,1,0:T(8,128)}', space=vmem, size = 0x2000, scoped, tag = 'scratch operand']
  #allocation6 [shape = 'f32[2,8,128]{2,1,0:T(8,128)}', space=vmem, size = 0x2000, scoped, tag = 'scratch operand']
  #allocation7 [shape = 'f32[2,8,128]{2,1,0:T(8,128)}', space=vmem, size = 0x2000, scoped, tag = 'scratch operand']
  %s0 = inlined_call_operand.hbm [shape: f32[2,8,128], index: 0, kind: input, shape index: {}]
  %s1 = inlined_call_operand.hbm [shape: f32[2,8,128], index: 1, kind: input, shape index: {}]
  %s2 = inlined_call_operand.hbm [shape: f32[2,8,128], index: 2, kind: input, shape index: {}]
  %s3 = inlined_call_operand.hbm [shape: f32[1,2,128], index: 3, kind: output, shape index: {}]
  %s4 = sld [smem:[#allocation0]]
  $region42: #{tpu_custom_call.1} parent=0
    _
  %s6 = ssub.s32 1, %s4
  %s7 = scalar_select 0, %s6, %s4
  $region1: #{tpu_custom_call.1} parent=0
    #allocation8 [shape = 'u8[8192]{0}', space=vmem, size = 0x2000, scoped, tag = 'input window, operand 0, single buffered']
    #allocation9 [shape = 's32[1]{0}', space=sflag, size = 0x4, scoped, tag = 'scoped memory for tpu_custom_call.1']
    #allocation10 [shape = 's32[1]{0}', space=sflag, size = 0x4, scoped, tag = 'scoped memory for tpu_custom_call.1']
    #allocation11 [shape = 'u8[8192]{0}', space=vmem, size = 0x2000, scoped, tag = 'input window, operand 1, single buffered']
    #allocation12 [shape = 's32[1]{0}', space=sflag, size = 0x4, scoped, tag = 'scoped memory for tpu_custom_call.1']
    #allocation13 [shape = 'u8[8192]{0}', space=vmem, size = 0x2000, scoped, tag = 'input window, operand 2, single buffered']
    #allocation14 [shape = 'u8[1024]{0}', space=vmem, size = 0x400, scoped, tag = 'output window, operand 0, single buffered']
    %8 = vsyncpa [#allocation9], 0
    %9 = vsyncpa [#allocation12], 0
    %10 = vsyncpa [#allocation10], 0
    // Predicated region
    $region2: #{tpu_custom_call.1} parent=1 // pred_check
      _
    $region3: #{tpu_custom_call.1} parent=1 // pred_check_branch
      %12 = sbr.rel (0) target = $region5
    $region4: #{tpu_custom_call.1} parent=1 // pred_region
      %s13 = sadd.s32 0, 0
      %s15 = ssub.s32 256, 256
      %16 = vsyncadd [#allocation9], %s15
      %s17 = smul.addr %s13, 128
      %s18 = scalar_lea.hbm %s0, %s17
      %s19 = sshll.u32 [#allocation8], 4
      %s20 = int_to_ptr.vmem [resolvable:$true] %s19
      %25 = dma.hbm_to_vmem [thread:$0]  %s18, 256, %s20, [#allocation9], 128, 128, 8
    $region5: #{tpu_custom_call.1} parent=1 // pred_fallthru
      _
    // Predicated region
    $region6: #{tpu_custom_call.1} parent=1 // pred_check
      _
    $region7: #{tpu_custom_call.1} parent=1 // pred_check_branch
      %27 = sbr.rel (0) target = $region9
    $region8: #{tpu_custom_call.1} parent=1 // pred_region
      %s28 = sadd.s32 0, 0
      %s30 = ssub.s32 256, 256
      %31 = vsyncadd [#allocation12], %s30
      %s32 = smul.addr %s28, 128
      %s33 = scalar_lea.hbm %s1, %s32
      %s34 = sshll.u32 [#allocation11], 4
      %s35 = int_to_ptr.vmem [resolvable:$true] %s34
      %40 = dma.hbm_to_vmem [thread:$0]  %s33, 256, %s35, [#allocation12], 128, 128, 8
    $region9: #{tpu_custom_call.1} parent=1 // pred_fallthru
      _
    // Predicated region
    $region10: #{tpu_custom_call.1} parent=1 // pred_check
      _
    $region11: #{tpu_custom_call.1} parent=1 // pred_check_branch
      %42 = sbr.rel (0) target = $region13
    $region12: #{tpu_custom_call.1} parent=1 // pred_region
      %s43 = sadd.s32 0, 0
      %s45 = ssub.s32 256, 256
      %46 = vsyncadd [#allocation12], %s45
      %s47 = smul.addr %s43, 128
      %s48 = scalar_lea.hbm %s2, %s47
      %s49 = sshll.u32 [#allocation13], 4
      %s50 = int_to_ptr.vmem [resolvable:$true] %s49
      %55 = dma.hbm_to_vmem [thread:$0]  %s48, 256, %s50, [#allocation12], 128, 128, 8
    $region13: #{tpu_custom_call.1} parent=1 // pred_fallthru
      _
    // Predicated region
    $region14: #{tpu_custom_call.1} parent=1 // pred_check
      _
    $region15: #{tpu_custom_call.1} parent=1 // pred_check_branch
      %57 = sbr.rel (0) target = $region17
    $region16: #{tpu_custom_call.1} parent=1 // pred_region
      %58 = dma.done [#allocation9], 256
    $region17: #{tpu_custom_call.1} parent=1 // pred_fallthru
      _
    // Predicated region
    $region18: #{tpu_custom_call.1} parent=1 // pred_check
      _
    $region19: #{tpu_custom_call.1} parent=1 // pred_check_branch
      %60 = sbr.rel (0) target = $region21
    $region20: #{tpu_custom_call.1} parent=1 // pred_region
      %61 = dma.done [#allocation12], 256
    $region21: #{tpu_custom_call.1} parent=1 // pred_fallthru
      _
    // Predicated region
    $region22: #{tpu_custom_call.1} parent=1 // pred_check
      _
    $region23: #{tpu_custom_call.1} parent=1 // pred_check_branch
      %63 = sbr.rel (0) target = $region25
    $region24: #{tpu_custom_call.1} parent=1 // pred_region
      %64 = dma.done [#allocation12], 256
    $region25: #{tpu_custom_call.1} parent=1 // pred_fallthru
      _
    %s65 = sadd.s32 0, 0
    %s66 = sadd.s32 0, 0
    %s67 = sadd.s32 0, 0
    %p68 = scmp.eq.s32.totalorder 0, 0
    // Predicated region
    $region26: #{tpu_custom_call.1} parent=1 // pred_check
      %p69 = pneg %p68
    $region27: #{tpu_custom_call.1} parent=1 // pred_check_branch
      %71 = sbr.rel (%p69) target = $region29
    $region28: #{tpu_custom_call.1} parent=1 // pred_region
      %72 = vst [vmem:[#allocation2] sm:$0xff] 0.0
      %73 = vst [vmem:[#allocation2 + $0x8] sm:$0xff] 0.0
      %74 = vst [vmem:[#allocation3] sm:$0xff] 0.0
      %75 = vst [vmem:[#allocation3 + $0x8] sm:$0xff] 0.0
      %76 = vst [vmem:[#allocation4] sm:$0xff] 0.0
      %77 = vst [vmem:[#allocation4 + $0x8] sm:$0xff] 0.0
      %78 = vst [vmem:[#allocation5] sm:$0xff] 0.0
      %79 = vst [vmem:[#allocation5 + $0x8] sm:$0xff] 0.0
      %80 = vst [vmem:[#allocation6] sm:$0xff] 0.0
      %81 = vst [vmem:[#allocation6 + $0x8] sm:$0xff] 0.0
      %82 = vst [vmem:[#allocation7] sm:$0xff] 0.0
      %83 = vst [vmem:[#allocation7 + $0x8] sm:$0xff] 0.0
    $region29: #{tpu_custom_call.1} parent=1 // pred_fallthru
      _
    %v84 = vld [vmem:[#allocation11] sm:$0xff]
    %v85 = vld [vmem:[#allocation11 + $0x8] sm:$0xff]
    %v86 = vld [vmem:[#allocation13] sm:$0xff]
    %v87 = vld [vmem:[#allocation13 + $0x8] sm:$0xff]
    %v88 = vld [vmem:[#allocation8] sm:$0xff]
    %v89 = vld [vmem:[#allocation8 + $0x8] sm:$0xff]
    %v90 = vand.u32 2147483647, %v84
    %v91 = vand.u32 2147483647, %v85
    %v92 = vsub.f32 0.0, %v90
    %v93 = vsub.f32 0.0, %v91
    %v94 = vmul.f32 %v92, 1.442695
    %v95 = vpow.pop %v94
    %v96 = vmul.f32 %v93, 1.442695
    %v97 = vpow.pop %v96
    %vm98 = vcmp.ge.f32.partialorder %v84, 0.0
    %vm99 = vcmp.ge.f32.partialorder %v85, 0.0
    %v100 = vsel %vm98, 1.0, %v95
    %v101 = vsel %vm99, 1.0, %v97
    %v102 = vadd.f32 %v95, 1.0
    %v103 = vadd.f32 %v97, 1.0
    %v104 = vrcp.pop %v102
    %v105 = vmul.f32 %v100, %v104
    %v106 = vrcp.pop %v103
    %v107 = vmul.f32 %v101, %v106
    %v108 = vmax.f32 %v84, 0.0
    %v109 = vmax.f32 %v85, 0.0
    %v110 = vmul.f32 %v84, %v86
    %v111 = vmul.f32 %v85, %v87
    %v112 = vsub.f32 %v108, %v110
    %v113 = vsub.f32 %v109, %v111
    %v114 = vadd.f32 %v95, 1.0
    %v115 = vlog2.pop %v114
    %v116 = vmul.f32 %v115, 0.6931472
    %v117 = vmul.f32 -0.5, %v95
    %v118 = vadd.f32 %v117, 1.0
    %v119 = vmul.f32 %v118, %v95
    %v120 = vand.u32 2147483647, %v95
    %vm121 = vcmp.lt.f32.partialorder %v120, 0.0004427343
    %v122 = vsel %vm121, %v119, %v116
    %v123 = vadd.f32 %v97, 1.0
    %v124 = vlog2.pop %v123
    %v125 = vmul.f32 %v124, 0.6931472
    %v126 = vmul.f32 -0.5, %v97
    %v127 = vadd.f32 %v126, 1.0
    %v128 = vmul.f32 %v127, %v97
    %v129 = vand.u32 2147483647, %v97
    %vm130 = vcmp.lt.f32.partialorder %v129, 0.0004427343
    %v131 = vsel %vm130, %v128, %v125
    %v132 = vadd.f32 %v112, %v122
    %v133 = vadd.f32 %v113, %v131
    %v134 = vld [vmem:[#allocation2] sm:$0xff]
    %v135 = vld [vmem:[#allocation2 + $0x8] sm:$0xff]
    %v136 = vadd.f32 %v134, %v105
    %v137 = vadd.f32 %v135, %v107
    %138 = vst [vmem:[#allocation2] sm:$0xff] %v136
    %139 = vst [vmem:[#allocation2 + $0x8] sm:$0xff] %v137
    %v140 = vld [vmem:[#allocation3] sm:$0xff]
    %v141 = vld [vmem:[#allocation3 + $0x8] sm:$0xff]
    %v142 = vadd.f32 %v140, %v86
    %v143 = vadd.f32 %v141, %v87
    %144 = vst [vmem:[#allocation3] sm:$0xff] %v142
    %145 = vst [vmem:[#allocation3 + $0x8] sm:$0xff] %v143
    %v146 = vld [vmem:[#allocation4] sm:$0xff]
    %v147 = vld [vmem:[#allocation4 + $0x8] sm:$0xff]
    %v148 = vmul.f32 %v105, %v86
    %v149 = vmul.f32 %v107, %v87
    %v150 = vadd.f32 %v146, %v148
    %v151 = vadd.f32 %v147, %v149
    %152 = vst [vmem:[#allocation4] sm:$0xff] %v150
    %153 = vst [vmem:[#allocation4 + $0x8] sm:$0xff] %v151
    %v154 = vld [vmem:[#allocation5] sm:$0xff]
    %v155 = vld [vmem:[#allocation5 + $0x8] sm:$0xff]
    %v156 = vadd.f32 %v154, %v132
    %v157 = vadd.f32 %v155, %v133
    %158 = vst [vmem:[#allocation5] sm:$0xff] %v156
    %159 = vst [vmem:[#allocation5 + $0x8] sm:$0xff] %v157
    %v160 = vld [vmem:[#allocation6] sm:$0xff]
    %v161 = vld [vmem:[#allocation6 + $0x8] sm:$0xff]
    %v162 = vmul.f32 %v86, %v132
    %v163 = vmul.f32 %v87, %v133
    %v164 = vadd.f32 %v160, %v162
    %v165 = vadd.f32 %v161, %v163
    %166 = vst [vmem:[#allocation6] sm:$0xff] %v164
    %167 = vst [vmem:[#allocation6 + $0x8] sm:$0xff] %v165
    %v168 = vld [vmem:[#allocation7] sm:$0xff]
    %v169 = vld [vmem:[#allocation7 + $0x8] sm:$0xff]
    %v170 = vmul.f32 %v86, %v88
    %v171 = vmul.f32 %v87, %v89
    %v172 = vmul.f32 %v170, %v132
    %v173 = vmul.f32 %v171, %v133
    %v174 = vadd.f32 %v168, %v172
    %v175 = vadd.f32 %v169, %v173
    %176 = vst [vmem:[#allocation7] sm:$0xff] %v174
    %177 = vst [vmem:[#allocation7 + $0x8] sm:$0xff] %v175
    // Predicated region
    $region30: #{tpu_custom_call.1} parent=1 // pred_check
      %p178 = pneg %p68
    $region31: #{tpu_custom_call.1} parent=1 // pred_check_branch
      %180 = sbr.rel (%p178) target = $region33
    $region32: #{tpu_custom_call.1} parent=1 // pred_region
      %v181 = vld [vmem:[#allocation4] sm:$0xff]
      %v182 = vld [vmem:[#allocation4 + $0x8] sm:$0xff]
      %183 = vadd.xlane.f32.xlu0 %v181
      %v184 = vpop.xlane.xlu0 %183
      %185 = vadd.xlane.f32.xlu0 %v182
      %v186 = vpop.xlane.xlu0 %185
      %v189 = vlaneseq
      %v190 = vand.u32 %v189, 127
      %v191 = vlaneseq
      %v192 = vshrl.u32 %v191, 7
      %v193 = vsub.s32 %v190, %v192
      %v194 = vrot.slane %v184, %v193
      %v195 = vlaneseq
      %v196 = vshrl.u32 %v195, 7
      %v197 = vsub.s32 %v190, %v196
      %v198 = vrot.slane %v186, %v197
      %vm199 = vcmask 1041409
      %v200 = vsel %vm199, %v198, %v194
      %vm202 = vcmask 58368
      %v203 = vsel %vm202, %v200, 0.0
      %204 = vadd.xlane.f32.xlu0 %v203
      %v205 = vpop.xlane.xlu0 %204
      %v206 = vld [vmem:[#allocation2] sm:$0xff]
      %v207 = vld [vmem:[#allocation2 + $0x8] sm:$0xff]
      %208 = vadd.xlane.f32.xlu0 %v206
      %v209 = vpop.xlane.xlu0 %208
      %210 = vadd.xlane.f32.xlu0 %v207
      %v211 = vpop.xlane.xlu0 %210
      %v214 = vlaneseq
      %v215 = vshrl.u32 %v214, 7
      %v216 = vsub.s32 %v190, %v215
      %v217 = vrot.slane %v209, %v216
      %v218 = vlaneseq
      %v219 = vshrl.u32 %v218, 7
      %v220 = vsub.s32 %v190, %v219
      %v221 = vrot.slane %v211, %v220
      %v222 = vsel %vm199, %v221, %v217
      %v224 = vsel %vm202, %v222, 0.0
      %225 = vadd.xlane.f32.xlu0 %v224
      %v226 = vpop.xlane.xlu0 %225
      %v227 = vld [vmem:[#allocation3] sm:$0xff]
      %v228 = vld [vmem:[#allocation3 + $0x8] sm:$0xff]
      %229 = vadd.xlane.f32.xlu0 %v227
      %v230 = vpop.xlane.xlu0 %229
      %231 = vadd.xlane.f32.xlu0 %v228
      %v232 = vpop.xlane.xlu0 %231
      %v235 = vlaneseq
      %v236 = vshrl.u32 %v235, 7
      %v237 = vsub.s32 %v190, %v236
      %v238 = vrot.slane %v230, %v237
      %v239 = vlaneseq
      %v240 = vshrl.u32 %v239, 7
      %v241 = vsub.s32 %v190, %v240
      %v242 = vrot.slane %v232, %v241
      %v243 = vsel %vm199, %v242, %v238
      %v245 = vsel %vm202, %v243, 0.0
      %246 = vadd.xlane.f32.xlu0 %v245
      %v247 = vpop.xlane.xlu0 %246
      %v248 = vld [vmem:[#allocation5] sm:$0xff]
      %v249 = vld [vmem:[#allocation5 + $0x8] sm:$0xff]
      %250 = vadd.xlane.f32.xlu0 %v248
      %v251 = vpop.xlane.xlu0 %250
      %252 = vadd.xlane.f32.xlu0 %v249
      %v253 = vpop.xlane.xlu0 %252
      %v256 = vlaneseq
      %v257 = vshrl.u32 %v256, 7
      %v258 = vsub.s32 %v190, %v257
      %v259 = vrot.slane %v251, %v258
      %v260 = vlaneseq
      %v261 = vshrl.u32 %v260, 7
      %v262 = vsub.s32 %v190, %v261
      %v263 = vrot.slane %v253, %v262
      %v264 = vsel %vm199, %v263, %v259
      %v266 = vsel %vm202, %v264, 0.0
      %267 = vadd.xlane.f32.xlu0 %v266
      %v268 = vpop.xlane.xlu0 %267
      %v269 = vld [vmem:[#allocation6] sm:$0xff]
      %v270 = vld [vmem:[#allocation6 + $0x8] sm:$0xff]
      %271 = vadd.xlane.f32.xlu0 %v269
      %v272 = vpop.xlane.xlu0 %271
      %273 = vadd.xlane.f32.xlu0 %v270
      %v274 = vpop.xlane.xlu0 %273
      %v277 = vlaneseq
      %v278 = vshrl.u32 %v277, 7
      %v279 = vsub.s32 %v190, %v278
      %v280 = vrot.slane %v272, %v279
      %v281 = vlaneseq
      %v282 = vshrl.u32 %v281, 7
      %v283 = vsub.s32 %v190, %v282
      %v284 = vrot.slane %v274, %v283
      %v285 = vsel %vm199, %v284, %v280
      %v287 = vsel %vm202, %v285, 0.0
      %288 = vadd.xlane.f32.xlu0 %v287
      %v289 = vpop.xlane.xlu0 %288
      %v290 = vld [vmem:[#allocation7] sm:$0xff]
      %v291 = vld [vmem:[#allocation7 + $0x8] sm:$0xff]
      %292 = vadd.xlane.f32.xlu0 %v290
      %v293 = vpop.xlane.xlu0 %292
      %294 = vadd.xlane.f32.xlu0 %v291
      %v295 = vpop.xlane.xlu0 %294
      %v298 = vlaneseq
      %v299 = vshrl.u32 %v298, 7
      %v300 = vsub.s32 %v190, %v299
      %v301 = vrot.slane %v293, %v300
      %v302 = vlaneseq
      %v303 = vshrl.u32 %v302, 7
      %v304 = vsub.s32 %v190, %v303
      %v305 = vrot.slane %v295, %v304
      %v306 = vsel %vm199, %v305, %v301
      %v308 = vsel %vm202, %v306, 0.0
      %309 = vadd.xlane.f32.xlu0 %v308
      %v310 = vpop.xlane.xlu0 %309
      %vm311 = vcmp.eq.s32.totalorder %v190, 0
      %v312 = vsel %vm311, %v205, 0.0
      %vm313 = vcmp.eq.s32.totalorder %v190, 1
      %v314 = vsel %vm313, %v226, %v312
      %vm315 = vcmp.eq.s32.totalorder %v190, 2
      %v316 = vsel %vm315, %v247, %v314
      %vm317 = vcmp.eq.s32.totalorder %v190, 3
      %v318 = vsel %vm317, %v268, %v316
      %vm319 = vcmp.eq.s32.totalorder %v190, 4
      %v320 = vsel %vm319, %v289, %v318
      %vm321 = vcmp.eq.s32.totalorder %v190, 5
      %v322 = vsel %vm321, %v310, %v320
      %323 = vst [vmem:[#allocation14] sm:$0x3] %v322
    $region33: #{tpu_custom_call.1} parent=1 // pred_fallthru
      _
    // Predicated region
    $region34: #{tpu_custom_call.1} parent=1 // pred_check
      _
    $region35: #{tpu_custom_call.1} parent=1 // pred_check_branch
      %325 = sbr.rel (0) target = $region37
    $region36: #{tpu_custom_call.1} parent=1 // pred_region
      %s327 = ssub.s32 32, 32
      %328 = vsyncadd [#allocation10], %s327
      %s330 = sshll.u32 [#allocation14], 4
      %s331 = int_to_ptr.vmem [resolvable:$true] %s330
      %333 = dma.vmem_to_hbm [thread:$0]  %s331, 32, %s3, [#allocation10]
    $region37: #{tpu_custom_call.1} parent=1 // pred_fallthru
      _
    // Predicated region
    $region38: #{tpu_custom_call.1} parent=1 // pred_check
      _
    $region39: #{tpu_custom_call.1} parent=1 // pred_check_branch
      %335 = sbr.rel (0) target = $region41
    $region40: #{tpu_custom_call.1} parent=1 // pred_region
      %336 = dma.done [#allocation10], 32
    $region41: #{tpu_custom_call.1} parent=1 // pred_fallthru
      _
    %337 = vsyncpa [#allocation9], 1
    %338 = vsyncpa [#allocation12], 1
    %339 = vsyncpa [#allocation10], 1

</llo_original>
